<compile_context>
chip_gen: v6e
topology: v6e:2x2x1
jax: 0.10.0
libtpu: 0.0.40
codegen_flags: <defaults>
</compile_context>

<pallas_src>
import functools

import jax
import jax.numpy as jnp
from jax import lax
from jax.experimental import pallas as pl
from jax.experimental.pallas import tpu as pltpu


def _spectral_mul_kernel(a_ref, w_ref, o_ref):
    """Complex channel contraction for one (cout-tile, batch-tile) block.

    a_ref: (Cin,  Bt,    2*Mp) activations, lanes = [real(Mp) | imag(Mp)]
    w_ref: (Cin,  tCout, 2*Mp) weights,     lanes = [real(Mp) | imag(Mp)]
    o_ref: (Bt,   tCout, 2*Mp) output,      lanes = [real(Mp) | imag(Mp)]
    """
    c_in = a_ref.shape[0]
    mp = a_ref.shape[-1] // 2

    def term(i):
        a_i = a_ref[i]                       # (Bt, 2Mp)
        w_i = w_ref[i]                       # (tCout, 2Mp)
        ar = a_i[:, None, :mp]               # (Bt, 1, Mp)
        ai = a_i[:, None, mp:]
        wr = w_i[None, :, :mp]               # (1, tCout, Mp)
        wi = w_i[None, :, mp:]
        # Plain 4-multiply complex product (no hoisted ws/wd tensors).
        return ar * wr - ai * wi, ar * wi + ai * wr

    # Peel channel 0 so accumulators are initialized by the first product.
    acc_r, acc_i = term(0)

    def body(i, carry):
        cr, ci = carry
        t_r, t_i = term(i)
        return cr + t_r, ci + t_i

    acc_r, acc_i = lax.fori_loop(1, c_in, body, (acc_r, acc_i), unroll=True)

    o_ref[:, :, :mp] = acc_r
    o_ref[:, :, mp:] = acc_i


def _pick_tile(n, cap):
    """Tile size t of n: t == n if n <= cap, else a multiple-of-8 divisor."""
    if n <= cap:
        return n
    for t in range(cap, 7, -1):
        if n % t == 0 and t % 8 == 0:
            return t
    return n


def _spectral_mul_pallas(a, w):
    """a: complex64 (Cin, B, M); w: complex64 (Cin, Cout, M).

    Returns complex64 (B, Cout, M), M = 2*modes1*modes2 (both freq blocks).
    """
    c_in, batch, m = a.shape
    c_out = w.shape[1]
    mp = max(128, ((m + 127) // 128) * 128)      # lane-dense half-width

    def pack(z):
        # complex (..., M) -> f32 (..., 2*Mp) with [real | imag] on lanes.
        r = jnp.real(z).astype(jnp.float32)
        im = jnp.imag(z).astype(jnp.float32)
        pad = [(0, 0)] * (z.ndim - 1) + [(0, mp - m)]
        return jnp.concatenate([jnp.pad(r, pad), jnp.pad(im, pad)], axis=-1)

    a_p = pack(a)                                # (Cin, B, 2Mp)
    w_p = pack(w)                                # (Cin, Cout, 2Mp)

    bt = _pick_tile(batch, 8)                    # batch tile (>=8 when avail.)
    tco = _pick_tile(c_out, 16)                  # cout tile (bounds wgt VMEM)
    grid = (c_out // tco, batch // bt)           # cout outer, batch inner:
                                                 # weights stay VMEM-resident.

    act_spec = pl.BlockSpec((c_in, bt, 2 * mp), lambda o, b: (0, b, 0))
    wgt_spec = pl.BlockSpec((c_in, tco, 2 * mp), lambda o, b: (0, o, 0))
    out_spec = pl.BlockSpec((bt, tco, 2 * mp), lambda o, b: (b, o, 0))

    o_p = pl.pallas_call(
        _spectral_mul_kernel,
        out_shape=jax.ShapeDtypeStruct((batch, c_out, 2 * mp), jnp.float32),
        grid=grid,
        in_specs=[act_spec, wgt_spec],
        out_specs=out_spec,
        compiler_params=pltpu.CompilerParams(
            dimension_semantics=("parallel", "parallel")),
    )(a_p, w_p)

    return (o_p[:, :, :m] + 1j * o_p[:, :, mp:mp + m]).astype(jnp.complex64)


@functools.partial(jax.jit, static_argnames=("modes1", "modes2"))
def spectral_conv2d_fast(x, w1, w2, *, modes1, modes2):
    """Forward pass of SpectralConv2d_fast.

    x:  (B, Cin, H, W) float32   (NCHW, same as the PyTorch module)
    w1: (Cin, Cout, modes1, modes2) complex64
    w2: (Cin, Cout, modes1, modes2) complex64
    returns: (B, Cout, H, W) float32
    """
    B, c_in, H, W = x.shape
    c_out = w1.shape[1]
    wf = W // 2 + 1
    m = modes1 * modes2

    x_ft = jnp.fft.rfft2(x)                                   # (B, Cin, H, wf)

    # Low / high (negative) frequency blocks, flattened and channel-major.
    a1 = x_ft[:, :, :modes1, :modes2].reshape(B, c_in, m)
    a2 = x_ft[:, :, H - modes1:, :modes2].reshape(B, c_in, m)
    a = jnp.concatenate([a1, a2], axis=-1).transpose(1, 0, 2)  # (Cin, B, 2m)

    w = jnp.concatenate(
        [w1.reshape(c_in, c_out, m), w2.reshape(c_in, c_out, m)],
        axis=-1)                                               # (Cin, Cout, 2m)

    o = _spectral_mul_pallas(a, w)                             # (B, Cout, 2m)
    o1 = o[:, :, :m].reshape(B, c_out, modes1, modes2)
    o2 = o[:, :, m:].reshape(B, c_out, modes1, modes2)

    out_ft = jnp.zeros((B, c_out, H, wf), dtype=jnp.complex64)
    out_ft = out_ft.at[:, :, :modes1, :modes2].set(o1)
    out_ft = out_ft.at[:, :, H - modes1:, :modes2].set(o2)

    return jnp.fft.irfft2(out_ft, s=(H, W)).astype(jnp.float32)


def _reference(x, w1, w2, modes1, modes2):
    """Pure-JAX reference mirroring the PyTorch forward."""
    B, c_in, H, W = x.shape
    c_out = w1.shape[1]
    x_ft = jnp.fft.rfft2(x)
    out_ft = jnp.zeros((B, c_out, H, W // 2 + 1), dtype=jnp.complex64)
    out_ft = out_ft.at[:, :, :modes1, :modes2].set(
        jnp.einsum("bixy,ioxy->boxy", x_ft[:, :, :modes1, :modes2], w1))
    out_ft = out_ft.at[:, :, H - modes1:, :modes2].set(
        jnp.einsum("bixy,ioxy->boxy", x_ft[:, :, -modes1:, :modes2], w2))
    return jnp.fft.irfft2(out_ft, s=(H, W))


if __name__ == "__main__":
    # Small, deterministic setup consistent with the module.
    B, C_IN, C_OUT = 2, 4, 4
    H, W = 16, 16
    MODES1, MODES2 = 6, 6
    scale = 1.0 / (C_IN * C_OUT)

    key = jax.random.PRNGKey(0)
    kx, k1r, k1i, k2r, k2i = jax.random.split(key, 5)

    x = jax.random.normal(kx, (B, C_IN, H, W), dtype=jnp.float32)

    # torch.rand(..., dtype=cfloat): real and imag parts uniform in [0, 1).
    w1 = (scale * jax.random.uniform(k1r, (C_IN, C_OUT, MODES1, MODES2))
          + 1j * scale * jax.random.uniform(k1i, (C_IN, C_OUT, MODES1, MODES2))
          ).astype(jnp.complex64)
    w2 = (scale * jax.random.uniform(k2r, (C_IN, C_OUT, MODES1, MODES2))
          + 1j * scale * jax.random.uniform(k2i, (C_IN, C_OUT, MODES1, MODES2))
          ).astype(jnp.complex64)

    out = spectral_conv2d_fast(x, w1, w2, modes1=MODES1, modes2=MODES2)
    out = jax.block_until_ready(out)

    ref = jax.block_until_ready(_reference(x, w1, w2, MODES1, MODES2))
    assert out.shape == (B, C_OUT, H, W)
    assert jnp.allclose(out, ref, rtol=1e-4, atol=1e-5), "mismatch vs reference"

    print("KERNEL_OK")
</pallas_src>

<mosaic_0001>
module attributes {stable_mosaic.version = 11 : i64} {
  func.func @_spectral_mul_kernel(%arg0: i32, %arg1: i32, %arg2: memref<4x2x256xf32, #tpu.memory_space<vmem>>, %arg3: memref<4x4x256xf32, #tpu.memory_space<vmem>>, %arg4: memref<2x4x256xf32, #tpu.memory_space<vmem>>) attributes {dimension_semantics = [#tpu.dimension_semantics<parallel>, #tpu.dimension_semantics<parallel>], iteration_bounds = array<i64: 1, 1>, scalar_prefetch = 0 : i64, scratch_operands = 0 : i64, tpu.core_type = #tpu.core_type<tc>, window_params = [{transform_indices = @transform_0, window_bounds = array<i64: 4, 2, 256>}, {transform_indices = @transform_1, window_bounds = array<i64: 4, 4, 256>}, {transform_indices = @transform_2, window_bounds = array<i64: 2, 4, 256>}]} {
    %c0 = arith.constant 0 : index
    %c0_0 = arith.constant 0 : index
    %c0_1 = arith.constant 0 : index
    %0 = vector.load %arg2[%c0, %c0_0, %c0_1] : memref<4x2x256xf32, #tpu.memory_space<vmem>>, vector<1x2x256xf32>
    %1 = vector.shape_cast %0 : vector<1x2x256xf32> to vector<2x256xf32>
    %c0_2 = arith.constant 0 : index
    %c0_3 = arith.constant 0 : index
    %c0_4 = arith.constant 0 : index
    %2 = vector.load %arg3[%c0_2, %c0_3, %c0_4] : memref<4x4x256xf32, #tpu.memory_space<vmem>>, vector<1x4x256xf32>
    %3 = vector.shape_cast %2 : vector<1x4x256xf32> to vector<4x256xf32>
    %4 = vector.extract_strided_slice %1 {offsets = [0, 0], sizes = [2, 128], strides = [1, 1]} : vector<2x256xf32> to vector<2x128xf32>
    %5 = vector.shape_cast %4 : vector<2x128xf32> to vector<2x1x128xf32>
    %6 = vector.extract_strided_slice %1 {offsets = [0, 128], sizes = [2, 128], strides = [1, 1]} : vector<2x256xf32> to vector<2x128xf32>
    %7 = vector.shape_cast %6 : vector<2x128xf32> to vector<2x1x128xf32>
    %8 = vector.extract_strided_slice %3 {offsets = [0, 0], sizes = [4, 128], strides = [1, 1]} : vector<4x256xf32> to vector<4x128xf32>
    %9 = vector.shape_cast %8 : vector<4x128xf32> to vector<1x4x128xf32>
    %10 = vector.extract_strided_slice %3 {offsets = [0, 128], sizes = [4, 128], strides = [1, 1]} : vector<4x256xf32> to vector<4x128xf32>
    %11 = vector.shape_cast %10 : vector<4x128xf32> to vector<1x4x128xf32>
    %12 = vector.broadcast %5 : vector<2x1x128xf32> to vector<2x4x128xf32>
    %13 = vector.broadcast %9 : vector<1x4x128xf32> to vector<2x4x128xf32>
    %14 = arith.mulf %12, %13 : vector<2x4x128xf32>
    %15 = vector.broadcast %7 : vector<2x1x128xf32> to vector<2x4x128xf32>
    %16 = vector.broadcast %11 : vector<1x4x128xf32> to vector<2x4x128xf32>
    %17 = arith.mulf %15, %16 : vector<2x4x128xf32>
    %18 = arith.subf %14, %17 : vector<2x4x128xf32>
    %19 = vector.broadcast %5 : vector<2x1x128xf32> to vector<2x4x128xf32>
    %20 = vector.broadcast %11 : vector<1x4x128xf32> to vector<2x4x128xf32>
    %21 = arith.mulf %19, %20 : vector<2x4x128xf32>
    %22 = vector.broadcast %7 : vector<2x1x128xf32> to vector<2x4x128xf32>
    %23 = vector.broadcast %9 : vector<1x4x128xf32> to vector<2x4x128xf32>
    %24 = arith.mulf %22, %23 : vector<2x4x128xf32>
    %25 = arith.addf %21, %24 : vector<2x4x128xf32>
    %c1_i32 = arith.constant 1 : i32
    %26 = arith.index_cast %c1_i32 : i32 to index
    %c0_5 = arith.constant 0 : index
    %c0_6 = arith.constant 0 : index
    %27 = vector.load %arg2[%26, %c0_5, %c0_6] : memref<4x2x256xf32, #tpu.memory_space<vmem>>, vector<1x2x256xf32>
    %28 = vector.shape_cast %27 : vector<1x2x256xf32> to vector<2x256xf32>
    %29 = arith.index_cast %c1_i32 : i32 to index
    %c0_7 = arith.constant 0 : index
    %c0_8 = arith.constant 0 : index
    %30 = vector.load %arg3[%29, %c0_7, %c0_8] : memref<4x4x256xf32, #tpu.memory_space<vmem>>, vector<1x4x256xf32>
    %31 = vector.shape_cast %30 : vector<1x4x256xf32> to vector<4x256xf32>
    %32 = vector.extract_strided_slice %28 {offsets = [0, 0], sizes = [2, 128], strides = [1, 1]} : vector<2x256xf32> to vector<2x128xf32>
    %33 = vector.shape_cast %32 : vector<2x128xf32> to vector<2x1x128xf32>
    %34 = vector.extract_strided_slice %28 {offsets = [0, 128], sizes = [2, 128], strides = [1, 1]} : vector<2x256xf32> to vector<2x128xf32>
    %35 = vector.shape_cast %34 : vector<2x128xf32> to vector<2x1x128xf32>
    %36 = vector.extract_strided_slice %31 {offsets = [0, 0], sizes = [4, 128], strides = [1, 1]} : vector<4x256xf32> to vector<4x128xf32>
    %37 = vector.shape_cast %36 : vector<4x128xf32> to vector<1x4x128xf32>
    %38 = vector.extract_strided_slice %31 {offsets = [0, 128], sizes = [4, 128], strides = [1, 1]} : vector<4x256xf32> to vector<4x128xf32>
    %39 = vector.shape_cast %38 : vector<4x128xf32> to vector<1x4x128xf32>
    %40 = vector.broadcast %33 : vector<2x1x128xf32> to vector<2x4x128xf32>
    %41 = vector.broadcast %37 : vector<1x4x128xf32> to vector<2x4x128xf32>
    %42 = arith.mulf %40, %41 : vector<2x4x128xf32>
    %43 = vector.broadcast %35 : vector<2x1x128xf32> to vector<2x4x128xf32>
    %44 = vector.broadcast %39 : vector<1x4x128xf32> to vector<2x4x128xf32>
    %45 = arith.mulf %43, %44 : vector<2x4x128xf32>
    %46 = arith.subf %42, %45 : vector<2x4x128xf32>
    %47 = vector.broadcast %33 : vector<2x1x128xf32> to vector<2x4x128xf32>
    %48 = vector.broadcast %39 : vector<1x4x128xf32> to vector<2x4x128xf32>
    %49 = arith.mulf %47, %48 : vector<2x4x128xf32>
    %50 = vector.broadcast %35 : vector<2x1x128xf32> to vector<2x4x128xf32>
    %51 = vector.broadcast %37 : vector<1x4x128xf32> to vector<2x4x128xf32>
    %52 = arith.mulf %50, %51 : vector<2x4x128xf32>
    %53 = arith.addf %49, %52 : vector<2x4x128xf32>
    %54 = arith.addf %18, %46 : vector<2x4x128xf32>
    %55 = arith.addf %25, %53 : vector<2x4x128xf32>
    %c2_i32 = arith.constant 2 : i32
    %56 = arith.index_cast %c2_i32 : i32 to index
    %c0_9 = arith.constant 0 : index
    %c0_10 = arith.constant 0 : index
    %57 = vector.load %arg2[%56, %c0_9, %c0_10] : memref<4x2x256xf32, #tpu.memory_space<vmem>>, vector<1x2x256xf32>
    %58 = vector.shape_cast %57 : vector<1x2x256xf32> to vector<2x256xf32>
    %59 = arith.index_cast %c2_i32 : i32 to index
    %c0_11 = arith.constant 0 : index
    %c0_12 = arith.constant 0 : index
    %60 = vector.load %arg3[%59, %c0_11, %c0_12] : memref<4x4x256xf32, #tpu.memory_space<vmem>>, vector<1x4x256xf32>
    %61 = vector.shape_cast %60 : vector<1x4x256xf32> to vector<4x256xf32>
    %62 = vector.extract_strided_slice %58 {offsets = [0, 0], sizes = [2, 128], strides = [1, 1]} : vector<2x256xf32> to vector<2x128xf32>
    %63 = vector.shape_cast %62 : vector<2x128xf32> to vector<2x1x128xf32>
    %64 = vector.extract_strided_slice %58 {offsets = [0, 128], sizes = [2, 128], strides = [1, 1]} : vector<2x256xf32> to vector<2x128xf32>
    %65 = vector.shape_cast %64 : vector<2x128xf32> to vector<2x1x128xf32>
    %66 = vector.extract_strided_slice %61 {offsets = [0, 0], sizes = [4, 128], strides = [1, 1]} : vector<4x256xf32> to vector<4x128xf32>
    %67 = vector.shape_cast %66 : vector<4x128xf32> to vector<1x4x128xf32>
    %68 = vector.extract_strided_slice %61 {offsets = [0, 128], sizes = [4, 128], strides = [1, 1]} : vector<4x256xf32> to vector<4x128xf32>
    %69 = vector.shape_cast %68 : vector<4x128xf32> to vector<1x4x128xf32>
    %70 = vector.broadcast %63 : vector<2x1x128xf32> to vector<2x4x128xf32>
    %71 = vector.broadcast %67 : vector<1x4x128xf32> to vector<2x4x128xf32>
    %72 = arith.mulf %70, %71 : vector<2x4x128xf32>
    %73 = vector.broadcast %65 : vector<2x1x128xf32> to vector<2x4x128xf32>
    %74 = vector.broadcast %69 : vector<1x4x128xf32> to vector<2x4x128xf32>
    %75 = arith.mulf %73, %74 : vector<2x4x128xf32>
    %76 = arith.subf %72, %75 : vector<2x4x128xf32>
    %77 = vector.broadcast %63 : vector<2x1x128xf32> to vector<2x4x128xf32>
    %78 = vector.broadcast %69 : vector<1x4x128xf32> to vector<2x4x128xf32>
    %79 = arith.mulf %77, %78 : vector<2x4x128xf32>
    %80 = vector.broadcast %65 : vector<2x1x128xf32> to vector<2x4x128xf32>
    %81 = vector.broadcast %67 : vector<1x4x128xf32> to vector<2x4x128xf32>
    %82 = arith.mulf %80, %81 : vector<2x4x128xf32>
    %83 = arith.addf %79, %82 : vector<2x4x128xf32>
    %84 = arith.addf %54, %76 : vector<2x4x128xf32>
    %85 = arith.addf %55, %83 : vector<2x4x128xf32>
    %c3_i32 = arith.constant 3 : i32
    %86 = arith.index_cast %c3_i32 : i32 to index
    %c0_13 = arith.constant 0 : index
    %c0_14 = arith.constant 0 : index
    %87 = vector.load %arg2[%86, %c0_13, %c0_14] : memref<4x2x256xf32, #tpu.memory_space<vmem>>, vector<1x2x256xf32>
    %88 = vector.shape_cast %87 : vector<1x2x256xf32> to vector<2x256xf32>
    %89 = arith.index_cast %c3_i32 : i32 to index
    %c0_15 = arith.constant 0 : index
    %c0_16 = arith.constant 0 : index
    %90 = vector.load %arg3[%89, %c0_15, %c0_16] : memref<4x4x256xf32, #tpu.memory_space<vmem>>, vector<1x4x256xf32>
    %91 = vector.shape_cast %90 : vector<1x4x256xf32> to vector<4x256xf32>
    %92 = vector.extract_strided_slice %88 {offsets = [0, 0], sizes = [2, 128], strides = [1, 1]} : vector<2x256xf32> to vector<2x128xf32>
    %93 = vector.shape_cast %92 : vector<2x128xf32> to vector<2x1x128xf32>
    %94 = vector.extract_strided_slice %88 {offsets = [0, 128], sizes = [2, 128], strides = [1, 1]} : vector<2x256xf32> to vector<2x128xf32>
    %95 = vector.shape_cast %94 : vector<2x128xf32> to vector<2x1x128xf32>
    %96 = vector.extract_strided_slice %91 {offsets = [0, 0], sizes = [4, 128], strides = [1, 1]} : vector<4x256xf32> to vector<4x128xf32>
    %97 = vector.shape_cast %96 : vector<4x128xf32> to vector<1x4x128xf32>
    %98 = vector.extract_strided_slice %91 {offsets = [0, 128], sizes = [4, 128], strides = [1, 1]} : vector<4x256xf32> to vector<4x128xf32>
    %99 = vector.shape_cast %98 : vector<4x128xf32> to vector<1x4x128xf32>
    %100 = vector.broadcast %93 : vector<2x1x128xf32> to vector<2x4x128xf32>
    %101 = vector.broadcast %97 : vector<1x4x128xf32> to vector<2x4x128xf32>
    %102 = arith.mulf %100, %101 : vector<2x4x128xf32>
    %103 = vector.broadcast %95 : vector<2x1x128xf32> to vector<2x4x128xf32>
    %104 = vector.broadcast %99 : vector<1x4x128xf32> to vector<2x4x128xf32>
    %105 = arith.mulf %103, %104 : vector<2x4x128xf32>
    %106 = arith.subf %102, %105 : vector<2x4x128xf32>
    %107 = vector.broadcast %93 : vector<2x1x128xf32> to vector<2x4x128xf32>
    %108 = vector.broadcast %99 : vector<1x4x128xf32> to vector<2x4x128xf32>
    %109 = arith.mulf %107, %108 : vector<2x4x128xf32>
    %110 = vector.broadcast %95 : vector<2x1x128xf32> to vector<2x4x128xf32>
    %111 = vector.broadcast %97 : vector<1x4x128xf32> to vector<2x4x128xf32>
    %112 = arith.mulf %110, %111 : vector<2x4x128xf32>
    %113 = arith.addf %109, %112 : vector<2x4x128xf32>
    %114 = arith.addf %84, %106 : vector<2x4x128xf32>
    %115 = arith.addf %85, %113 : vector<2x4x128xf32>
    %c3_i32_17 = arith.constant 3 : i32
    %c0_18 = arith.constant 0 : index
    %c0_19 = arith.constant 0 : index
    %c0_20 = arith.constant 0 : index
    %116 = vector.load %arg4[%c0_18, %c0_19, %c0_20] : memref<2x4x256xf32, #tpu.memory_space<vmem>>, vector<2x4x128xf32>
    tpu.vector_store %arg4[%c0_18, %c0_19, %c0_20], %114 {strides = array<i32>} : memref<2x4x256xf32, #tpu.memory_space<vmem>>, vector<2x4x128xf32>,
    %c0_21 = arith.constant 0 : index
    %c0_22 = arith.constant 0 : index
    %c128 = arith.constant 128 : index
    %117 = vector.load %arg4[%c0_21, %c0_22, %c128] : memref<2x4x256xf32, #tpu.memory_space<vmem>>, vector<2x4x128xf32>
    tpu.vector_store %arg4[%c0_21, %c0_22, %c128], %115 {strides = array<i32>} : memref<2x4x256xf32, #tpu.memory_space<vmem>>, vector<2x4x128xf32>,
    return
  }
  func.func @transform_0(%arg0: i32, %arg1: i32) -> (i32, i32, i32) {
    %c0_i32 = arith.constant 0 : i32
    %c0_i32_0 = arith.constant 0 : i32
    %c0_i32_1 = arith.constant 0 : i32
    return %c0_i32, %arg1, %c0_i32_0 : i32, i32, i32
  }
  func.func @transform_1(%arg0: i32, %arg1: i32) -> (i32, i32, i32) {
    %c0_i32 = arith.constant 0 : i32
    %c0_i32_0 = arith.constant 0 : i32
    %c0_i32_1 = arith.constant 0 : i32
    return %c0_i32, %arg0, %c0_i32_0 : i32, i32, i32
  }
  func.func @transform_2(%arg0: i32, %arg1: i32) -> (i32, i32, i32) {
    %c0_i32 = arith.constant 0 : i32
    %c0_i32_0 = arith.constant 0 : i32
    return %arg1, %arg0, %c0_i32 : i32, i32, i32
  }
}

</mosaic_0001>

<llo_original>
// kernel: custom-call
$region0: #{custom-call}
  %s0 = inlined_call_operand.hbm [shape: c64[4,4,6,6], index: 0, kind: input, shape index: {}]
  %s1 = inlined_call_operand.vmem [shape: f32[4,4,6,6], index: 1, kind: output, shape index: {}]
  $region1: #{custom-call} parent=0
    #allocation0 [shape = 's32[1]{0}', space=sflag, size = 0x4, scoped, tag = 'scoped memory for custom-call']
    %2 = vsyncpa [#allocation0], 0
    %s3 = sshll.u32 %s1, 4
    %s4 = int_to_ptr.vmem [resolvable:$true] %s3
    %6 = dma.hbm_to_vmem [thread:$0]  %s0, 1536, %s4, [#allocation0]
    %7 = dma.done [#allocation0], 1536
    %8 = vsyncpa [#allocation0], 1

// kernel: custom-call.1
$region0: #{custom-call.1}
  %s0 = inlined_call_operand.hbm [shape: c64[4,4,6,6], index: 0, kind: input, shape index: {}]
  %s1 = inlined_call_operand.vmem [shape: f32[4,4,6,6], index: 1, kind: output, shape index: {}]
  %s2 = scalar_lea.hbm %s0, 1536
  $region1: #{custom-call.1} parent=0
    #allocation0 [shape = 's32[1]{0}', space=sflag, size = 0x4, scoped, tag = 'scoped memory for custom-call.1']
    %3 = vsyncpa [#allocation0], 0
    %s4 = sshll.u32 %s1, 4
    %s5 = int_to_ptr.vmem [resolvable:$true] %s4
    %7 = dma.hbm_to_vmem [thread:$0]  %s2, 1536, %s5, [#allocation0]
    %8 = dma.done [#allocation0], 1536
    %9 = vsyncpa [#allocation0], 1

// kernel: spectral_conv2d_fast.1
$region0: #{spectral_conv2d_fast.1}
  #allocation0 [shape = 'u32[]', space=smem, size = 0x4, offset = 0x4, fixed_abs, tag = 'smem constant byte address 0x4 - core index']
  #allocation1 [shape = 'u32[144,128]{1,0:T(1,128)}', space=vmem, size = 0x12000, scoped, tag = 'internal scratch']
  %s0 = inlined_call_operand.vmem [shape: f32[4,2,256], index: 0, kind: input, shape index: {}]
  %s1 = inlined_call_operand.vmem [shape: f32[4,4,256], index: 1, kind: input, shape index: {}]
  %s2 = inlined_call_operand.vmem [shape: f32[2,4,256], index: 2, kind: output, shape index: {}]
  %s3 = sld [smem:[#allocation0]]
  $region18: #{spectral_conv2d_fast.1} parent=0
    _
  %s5 = ssub.s32 1, %s3
  %s6 = scalar_select 0, %s5, %s3
  // Predicated region
  $region2: #{spectral_conv2d_fast.1} parent=0 // pred_check
    _
  $region3: #{spectral_conv2d_fast.1} parent=0 // pred_check_branch
    %8 = sbr.rel (0) target = $region5
  $region4: #{spectral_conv2d_fast.1} parent=0 // pred_region
    _
  $region5: #{spectral_conv2d_fast.1} parent=0 // pred_fallthru
    _
  // Predicated region
  $region6: #{spectral_conv2d_fast.1} parent=0 // pred_check
    _
  $region7: #{spectral_conv2d_fast.1} parent=0 // pred_check_branch
    %10 = sbr.rel (0) target = $region9
  $region8: #{spectral_conv2d_fast.1} parent=0 // pred_region
    _
  $region9: #{spectral_conv2d_fast.1} parent=0 // pred_fallthru
    _
  %v11 = vld [vmem:[%s0] sm:$0xf]
  %v12 = vld [vmem:[%s1] sm:$0xff]
  %v15 = vunpack.c.l.s4 1966171168
  %v16 = vunpack.c.0.s8 %v15
  %v17 = vlaneseq
  %v18 = vshrl.u32 %v17, 7
  %v19 = vsub.s32 %v16, %v18
  %v20 = vrot.slane %v11, %v19
  %v21 = vcombine.high %v20, %v20
  %v22 = vrot.slane %v20, 1
  %v23 = vrot.slane %v21, 1
  %v24 = vlaneseq
  %v25 = vshrl.u32 %v24, 7
  %v26 = vsub.s32 0, %v25
  %v27 = vrot.slane %v20, %v26
  %v28 = vlaneseq
  %v29 = vshrl.u32 %v28, 7
  %v30 = vsub.s32 0, %v29
  %v31 = vrot.slane %v21, %v30
  %v34 = vmul.f32 %v27, %v12
  %v35 = vmul.f32 %v31, %v12
  %v36 = vlaneseq
  %v37 = vshrl.u32 %v36, 7
  %v38 = vsub.s32 0, %v37
  %v39 = vrot.slane %v22, %v38
  %v40 = vlaneseq
  %v41 = vshrl.u32 %v40, 7
  %v42 = vsub.s32 0, %v41
  %v43 = vrot.slane %v23, %v42
  %v47 = vrot.slane %v12, 4
  %v49 = vmul.f32 %v39, %v47
  %v50 = vmul.f32 %v43, %v47
  %v51 = vsub.f32 %v34, %v49
  %v52 = vsub.f32 %v35, %v50
  %v53 = vmul.f32 %v27, %v47
  %v54 = vmul.f32 %v31, %v47
  %v55 = vmul.f32 %v39, %v12
  %v56 = vmul.f32 %v43, %v12
  %v57 = vadd.f32 %v53, %v55
  %v58 = vadd.f32 %v54, %v56
  %s59 = scalar_lea.vmem %s0, 4
  %v60 = vld [vmem:[%s59] sm:$0xf]
  %s61 = scalar_lea.vmem %s1, 8
  %v62 = vld [vmem:[%s61] sm:$0xff]
  %v65 = vunpack.c.l.s4 1966171168
  %v66 = vunpack.c.0.s8 %v65
  %v67 = vlaneseq
  %v68 = vshrl.u32 %v67, 7
  %v69 = vsub.s32 %v66, %v68
  %v70 = vrot.slane %v60, %v69
  %v71 = vcombine.high %v70, %v70
  %v72 = vrot.slane %v70, 1
  %v73 = vrot.slane %v71, 1
  %v74 = vlaneseq
  %v75 = vshrl.u32 %v74, 7
  %v76 = vsub.s32 0, %v75
  %v77 = vrot.slane %v70, %v76
  %v78 = vlaneseq
  %v79 = vshrl.u32 %v78, 7
  %v80 = vsub.s32 0, %v79
  %v81 = vrot.slane %v71, %v80
  %v84 = vmul.f32 %v77, %v62
  %v85 = vmul.f32 %v81, %v62
  %v86 = vlaneseq
  %v87 = vshrl.u32 %v86, 7
  %v88 = vsub.s32 0, %v87
  %v89 = vrot.slane %v72, %v88
  %v90 = vlaneseq
  %v91 = vshrl.u32 %v90, 7
  %v92 = vsub.s32 0, %v91
  %v93 = vrot.slane %v73, %v92
  %v97 = vrot.slane %v62, 4
  %v99 = vmul.f32 %v89, %v97
  %v100 = vmul.f32 %v93, %v97
  %v101 = vsub.f32 %v84, %v99
  %v102 = vsub.f32 %v85, %v100
  %v103 = vmul.f32 %v77, %v97
  %v104 = vmul.f32 %v81, %v97
  %v105 = vmul.f32 %v89, %v62
  %v106 = vmul.f32 %v93, %v62
  %v107 = vadd.f32 %v103, %v105
  %v108 = vadd.f32 %v104, %v106
  %v109 = vadd.f32 %v51, %v101
  %v110 = vadd.f32 %v52, %v102
  %v111 = vadd.f32 %v57, %v107
  %v112 = vadd.f32 %v58, %v108
  %s113 = scalar_lea.vmem %s0, 8
  %v114 = vld [vmem:[%s113] sm:$0xf]
  %s115 = scalar_lea.vmem %s1, 16
  %v116 = vld [vmem:[%s115] sm:$0xff]
  %v119 = vunpack.c.l.s4 1966171168
  %v120 = vunpack.c.0.s8 %v119
  %v121 = vlaneseq
  %v122 = vshrl.u32 %v121, 7
  %v123 = vsub.s32 %v120, %v122
  %v124 = vrot.slane %v114, %v123
  %v125 = vcombine.high %v124, %v124
  %v126 = vrot.slane %v124, 1
  %v127 = vrot.slane %v125, 1
  %v128 = vlaneseq
  %v129 = vshrl.u32 %v128, 7
  %v130 = vsub.s32 0, %v129
  %v131 = vrot.slane %v124, %v130
  %v132 = vlaneseq
  %v133 = vshrl.u32 %v132, 7
  %v134 = vsub.s32 0, %v133
  %v135 = vrot.slane %v125, %v134
  %v138 = vmul.f32 %v131, %v116
  %v139 = vmul.f32 %v135, %v116
  %v140 = vlaneseq
  %v141 = vshrl.u32 %v140, 7
  %v142 = vsub.s32 0, %v141
  %v143 = vrot.slane %v126, %v142
  %v144 = vlaneseq
  %v145 = vshrl.u32 %v144, 7
  %v146 = vsub.s32 0, %v145
  %v147 = vrot.slane %v127, %v146
  %v151 = vrot.slane %v116, 4
  %v153 = vmul.f32 %v143, %v151
  %v154 = vmul.f32 %v147, %v151
  %v155 = vsub.f32 %v138, %v153
  %v156 = vsub.f32 %v139, %v154
  %v157 = vmul.f32 %v131, %v151
  %v158 = vmul.f32 %v135, %v151
  %v159 = vmul.f32 %v143, %v116
  %v160 = vmul.f32 %v147, %v116
  %v161 = vadd.f32 %v157, %v159
  %v162 = vadd.f32 %v158, %v160
  %v163 = vadd.f32 %v109, %v155
  %v164 = vadd.f32 %v110, %v156
  %v165 = vadd.f32 %v111, %v161
  %v166 = vadd.f32 %v112, %v162
  %s167 = scalar_lea.vmem %s0, 12
  %v168 = vld [vmem:[%s167] sm:$0xf]
  %s169 = scalar_lea.vmem %s1, 24
  %v170 = vld [vmem:[%s169] sm:$0xff]
  %v173 = vunpack.c.l.s4 1966171168
  %v174 = vunpack.c.0.s8 %v173
  %v175 = vlaneseq
  %v176 = vshrl.u32 %v175, 7
  %v177 = vsub.s32 %v174, %v176
  %v178 = vrot.slane %v168, %v177
  %v179 = vcombine.high %v178, %v178
  %v180 = vrot.slane %v178, 1
  %v181 = vrot.slane %v179, 1
  %v182 = vlaneseq
  %v183 = vshrl.u32 %v182, 7
  %v184 = vsub.s32 0, %v183
  %v185 = vrot.slane %v178, %v184
  %v186 = vlaneseq
  %v187 = vshrl.u32 %v186, 7
  %v188 = vsub.s32 0, %v187
  %v189 = vrot.slane %v179, %v188
  %v192 = vmul.f32 %v185, %v170
  %v193 = vmul.f32 %v189, %v170
  %v194 = vlaneseq
  %v195 = vshrl.u32 %v194, 7
  %v196 = vsub.s32 0, %v195
  %v197 = vrot.slane %v180, %v196
  %v198 = vlaneseq
  %v199 = vshrl.u32 %v198, 7
  %v200 = vsub.s32 0, %v199
  %v201 = vrot.slane %v181, %v200
  %v205 = vrot.slane %v170, 4
  %v207 = vmul.f32 %v197, %v205
  %v208 = vmul.f32 %v201, %v205
  %v209 = vsub.f32 %v192, %v207
  %v210 = vsub.f32 %v193, %v208
  %v211 = vmul.f32 %v185, %v205
  %v212 = vmul.f32 %v189, %v205
  %v213 = vmul.f32 %v197, %v170
  %v214 = vmul.f32 %v201, %v170
  %v215 = vadd.f32 %v211, %v213
  %v216 = vadd.f32 %v212, %v214
  %v217 = vadd.f32 %v163, %v209
  %v218 = vadd.f32 %v164, %v210
  %v219 = vadd.f32 %v165, %v215
  %v220 = vadd.f32 %v166, %v216
  %221 = vst [vmem:[%s2] sm:$0xf] %v217
  %222 = vst [vmem:[%s2 + $0x8] sm:$0xf] %v218
  %223 = vst [vmem:[%s2 + $0x4] sm:$0xf] %v219
  %224 = vst [vmem:[%s2 + $0xc] sm:$0xf] %v220
  // Predicated region
  $region10: #{spectral_conv2d_fast.1} parent=0 // pred_check
    _
  $region11: #{spectral_conv2d_fast.1} parent=0 // pred_check_branch
    %226 = sbr.rel (0) target = $region13
  $region12: #{spectral_conv2d_fast.1} parent=0 // pred_region
    _
  $region13: #{spectral_conv2d_fast.1} parent=0 // pred_fallthru
    _
  // Predicated region
  $region14: #{spectral_conv2d_fast.1} parent=0 // pred_check
    _
  $region15: #{spectral_conv2d_fast.1} parent=0 // pred_check_branch
    %228 = sbr.rel (0) target = $region17
  $region16: #{spectral_conv2d_fast.1} parent=0 // pred_region
    _
  $region17: #{spectral_conv2d_fast.1} parent=0 // pred_fallthru
    _

// kernel: reverse.0
$region0: #{reverse.0}
  %s0 = inlined_call_operand.vmem [shape: f32[2,4,16,7], index: 0, kind: input, shape index: {}]
  %s1 = inlined_call_operand.vmem [shape: f32[2,4,16,7], index: 1, kind: output, shape index: {}]
  $region1: #{reverse.0} parent=0
    #allocation0 [shape = 'u8[65536]{0}', space=vmem, size = 0x10000, scoped, tag = 'operand span for operand 0']
    #allocation1 [shape = 'u8[32768]{0}', space=vmem, size = 0x8000, scoped, tag = 'operand span for operand 1']
    %s2 = scalar_lea.vmem [#allocation0], 8
    // Predicated region
    $region2: #{reverse.0} parent=1 // pred_check
      _
    $region3: #{reverse.0} parent=1 // pred_check_branch
      %4 = sbr.rel (0) target = $region5
    $region4: #{reverse.0} parent=1 // pred_region
      // Predicated region
      $region6: #{reverse.0} parent=4 // pred_check
        _
      $region7: #{reverse.0} parent=4 // pred_check_branch
        %6 = sbr.rel (0) target = $region9
      $region8: #{reverse.0} parent=4 // pred_region
        // Predicated region
        $region21: #{reverse.0} parent=8 // pred_check
          _
        $region22: #{reverse.0} parent=8 // pred_check_branch
          %36 = sbr.rel (0) target = $region24
        $region23: #{reverse.0} parent=8 // pred_region
          loop: start=0, step=1, limit=1
          $region25: #{reverse.0} parent=23 // loop_pre_header
            _
          $region26: #{reverse.0} parent=23 // loop_header
            %s38 = sphi 0, %s42
            %p39 = scmp.ge.s32.totalorder %s38, 1
            %s43 = sphi %s0, %s0
            %s44 = sphi %s2, %s2
          $region27: #{reverse.0} parent=23 // loop_header_branch
            %41 = sbr.rel (%p39) target = $region31
          $region28: #{reverse.0} parent=23 // loop_body
            %v45 = vld [vmem:[%s43] sm:$0xff]
            %46 = vst [vmem:[%s44] sm:$0xff] %v45
            %v47 = vld [vmem:[%s43 + $0x8] sm:$0xff]
            %48 = vst [vmem:[%s44 + $0x10] sm:$0xff] %v47
            %v49 = vld [vmem:[%s43 + $0x10] sm:$0xff]
            %50 = vst [vmem:[%s44 + $0x20] sm:$0xff] %v49
            %v51 = vld [vmem:[%s43 + $0x18] sm:$0xff]
            %52 = vst [vmem:[%s44 + $0x30] sm:$0xff] %v51
            %v53 = vld [vmem:[%s43 + $0x20] sm:$0xff]
            %54 = vst [vmem:[%s44 + $0x40] sm:$0xff] %v53
            %v55 = vld [vmem:[%s43 + $0x28] sm:$0xff]
            %56 = vst [vmem:[%s44 + $0x50] sm:$0xff] %v55
            %v57 = vld [vmem:[%s43 + $0x30] sm:$0xff]
            %58 = vst [vmem:[%s44 + $0x60] sm:$0xff] %v57
            %v59 = vld [vmem:[%s43 + $0x38] sm:$0xff]
            %60 = vst [vmem:[%s44 + $0x70] sm:$0xff] %v59
          $region29: #{reverse.0} parent=23 // loop_footer
            %s42 = sadd.s32 1, %s38
          $region30: #{reverse.0} parent=23 // loop_footer_branch
            %37 = sbr.rel target = $region26
          $region31: #{reverse.0} parent=23 // loop_exit
            _
        $region24: #{reverse.0} parent=8 // pred_fallthru
          _
        // Predicated region
        $region32: #{reverse.0} parent=8 // pred_check
          _
        $region33: #{reverse.0} parent=8 // pred_check_branch
          %62 = sbr.rel target = $region35
        $region34: #{reverse.0} parent=8 // pred_region
          _
        $region35: #{reverse.0} parent=8 // pred_fallthru
          _
      $region9: #{reverse.0} parent=4 // pred_fallthru
        _
      // Predicated region
      $region10: #{reverse.0} parent=4 // pred_check
        _
      $region11: #{reverse.0} parent=4 // pred_check_branch
        %8 = sbr.rel target = $region13
      $region12: #{reverse.0} parent=4 // pred_region
        %s10 = ssub.s32 256, 1
        loop: start=0, step=1, limit=1
        $region14: #{reverse.0} parent=12 // loop_pre_header
          _
        $region15: #{reverse.0} parent=12 // loop_header
          %s12 = sphi 0, %s16
          %p13 = scmp.ge.s32.totalorder %s12, 1
          %s17 = sphi %s0, %s0
          %s18 = sphi %s2, %s2
        $region16: #{reverse.0} parent=12 // loop_header_branch
          %15 = sbr.rel (%p13) target = $region20
        $region17: #{reverse.0} parent=12 // loop_body
          %v19 = vld [vmem:[%s17] sm:%s10]
          %20 = vst [vmem:[%s18] sm:%s10] %v19
          %v21 = vld [vmem:[%s17 + $0x8] sm:%s10]
          %22 = vst [vmem:[%s18 + $0x10] sm:%s10] %v21
          %v23 = vld [vmem:[%s17 + $0x10] sm:%s10]
          %24 = vst [vmem:[%s18 + $0x20] sm:%s10] %v23
          %v25 = vld [vmem:[%s17 + $0x18] sm:%s10]
          %26 = vst [vmem:[%s18 + $0x30] sm:%s10] %v25
          %v27 = vld [vmem:[%s17 + $0x20] sm:%s10]
          %28 = vst [vmem:[%s18 + $0x40] sm:%s10] %v27
          %v29 = vld [vmem:[%s17 + $0x28] sm:%s10]
          %30 = vst [vmem:[%s18 + $0x50] sm:%s10] %v29
          %v31 = vld [vmem:[%s17 + $0x30] sm:%s10]
          %32 = vst [vmem:[%s18 + $0x60] sm:%s10] %v31
          %v33 = vld [vmem:[%s17 + $0x38] sm:%s10]
          %34 = vst [vmem:[%s18 + $0x70] sm:%s10] %v33
        $region18: #{reverse.0} parent=12 // loop_footer
          %s16 = sadd.s32 1, %s12
        $region19: #{reverse.0} parent=12 // loop_footer_branch
          %11 = sbr.rel target = $region15
        $region20: #{reverse.0} parent=12 // loop_exit
          _
      $region13: #{reverse.0} parent=4 // pred_fallthru
        _
    $region5: #{reverse.0} parent=1 // pred_fallthru
      _
    %63 = vnop
    %s64 = scalar_lea.vmem [#allocation0], 7
    %v65 = vld [vmem:[%s64] ss:$-1 sm:$0xff]
    %v66 = vrot.slane %v65, 1
    %67 = vst [vmem:[#allocation1] sm:$0xff] %v66
    %s68 = scalar_lea.vmem [#allocation0], 8
    %s69 = scalar_lea.vmem %s68, 7 [#allocation0]
    %v70 = vld [vmem:[%s69] ss:$-1 sm:$0xff]
    %v71 = vrot.slane %v70, 1
    %v72 = vlaneseq
    %v73 = vshrl.u32 %v72, 7
    %vm74 = vcmp.lt.s32.totalorder %v73, 7
    %75 = vst.msk [vmem:[#allocation1] sm:$0xff] %vm74, %v71
    %s76 = scalar_lea.vmem [#allocation1], 8
    %s77 = scalar_lea.vmem [#allocation0], 16
    %s78 = scalar_lea.vmem %s77, 7 [#allocation0]
    %v79 = vld [vmem:[%s78] ss:$-1 sm:$0xff]
    %v80 = vrot.slane %v79, 1
    %81 = vst [vmem:[%s76] sm:$0xff] %v80
    %s82 = scalar_lea.vmem %s77, 8 [#allocation0]
    %s83 = scalar_lea.vmem %s82, 7 [#allocation0]
    %v84 = vld [vmem:[%s83] ss:$-1 sm:$0xff]
    %v85 = vrot.slane %v84, 1
    %v86 = vlaneseq
    %v87 = vshrl.u32 %v86, 7
    %vm88 = vcmp.lt.s32.totalorder %v87, 7
    %89 = vst.msk [vmem:[%s76] sm:$0xff] %vm88, %v85
    %s90 = scalar_lea.vmem [#allocation1], 16
    %s91 = scalar_lea.vmem [#allocation0], 32
    %s92 = scalar_lea.vmem %s91, 7 [#allocation0]
    %v93 = vld [vmem:[%s92] ss:$-1 sm:$0xff]
    %v94 = vrot.slane %v93, 1
    %95 = vst [vmem:[%s90] sm:$0xff] %v94
    %s96 = scalar_lea.vmem %s91, 8 [#allocation0]
    %s97 = scalar_lea.vmem %s96, 7 [#allocation0]
    %v98 = vld [vmem:[%s97] ss:$-1 sm:$0xff]
    %v99 = vrot.slane %v98, 1
    %v100 = vlaneseq
    %v101 = vshrl.u32 %v100, 7
    %vm102 = vcmp.lt.s32.totalorder %v101, 7
    %103 = vst.msk [vmem:[%s90] sm:$0xff] %vm102, %v99
    %s104 = scalar_lea.vmem [#allocation1], 24
    %s105 = scalar_lea.vmem [#allocation0], 48
    %s106 = scalar_lea.vmem %s105, 7 [#allocation0]
    %v107 = vld [vmem:[%s106] ss:$-1 sm:$0xff]
    %v108 = vrot.slane %v107, 1
    %109 = vst [vmem:[%s104] sm:$0xff] %v108
    %s110 = scalar_lea.vmem %s105, 8 [#allocation0]
    %s111 = scalar_lea.vmem %s110, 7 [#allocation0]
    %v112 = vld [vmem:[%s111] ss:$-1 sm:$0xff]
    %v113 = vrot.slane %v112, 1
    %v114 = vlaneseq
    %v115 = vshrl.u32 %v114, 7
    %vm116 = vcmp.lt.s32.totalorder %v115, 7
    %117 = vst.msk [vmem:[%s104] sm:$0xff] %vm116, %v113
    %s118 = scalar_lea.vmem [#allocation1], 32
    %s119 = scalar_lea.vmem [#allocation0], 64
    %s120 = scalar_lea.vmem %s119, 7 [#allocation0]
    %v121 = vld [vmem:[%s120] ss:$-1 sm:$0xff]
    %v122 = vrot.slane %v121, 1
    %123 = vst [vmem:[%s118] sm:$0xff] %v122
    %s124 = scalar_lea.vmem %s119, 8 [#allocation0]
    %s125 = scalar_lea.vmem %s124, 7 [#allocation0]
    %v126 = vld [vmem:[%s125] ss:$-1 sm:$0xff]
    %v127 = vrot.slane %v126, 1
    %v128 = vlaneseq
    %v129 = vshrl.u32 %v128, 7
    %vm130 = vcmp.lt.s32.totalorder %v129, 7
    %131 = vst.msk [vmem:[%s118] sm:$0xff] %vm130, %v127
    %s132 = scalar_lea.vmem [#allocation1], 40
    %s133 = scalar_lea.vmem [#allocation0], 80
    %s134 = scalar_lea.vmem %s133, 7 [#allocation0]
    %v135 = vld [vmem:[%s134] ss:$-1 sm:$0xff]
    %v136 = vrot.slane %v135, 1
    %137 = vst [vmem:[%s132] sm:$0xff] %v136
    %s138 = scalar_lea.vmem %s133, 8 [#allocation0]
    %s139 = scalar_lea.vmem %s138, 7 [#allocation0]
    %v140 = vld [vmem:[%s139] ss:$-1 sm:$0xff]
    %v141 = vrot.slane %v140, 1
    %v142 = vlaneseq
    %v143 = vshrl.u32 %v142, 7
    %vm144 = vcmp.lt.s32.totalorder %v143, 7
    %145 = vst.msk [vmem:[%s132] sm:$0xff] %vm144, %v141
    %s146 = scalar_lea.vmem [#allocation1], 48
    %s147 = scalar_lea.vmem [#allocation0], 96
    %s148 = scalar_lea.vmem %s147, 7 [#allocation0]
    %v149 = vld [vmem:[%s148] ss:$-1 sm:$0xff]
    %v150 = vrot.slane %v149, 1
    %151 = vst [vmem:[%s146] sm:$0xff] %v150
    %s152 = scalar_lea.vmem %s147, 8 [#allocation0]
    %s153 = scalar_lea.vmem %s152, 7 [#allocation0]
    %v154 = vld [vmem:[%s153] ss:$-1 sm:$0xff]
    %v155 = vrot.slane %v154, 1
    %v156 = vlaneseq
    %v157 = vshrl.u32 %v156, 7
    %vm158 = vcmp.lt.s32.totalorder %v157, 7
    %159 = vst.msk [vmem:[%s146] sm:$0xff] %vm158, %v155
    %s160 = scalar_lea.vmem [#allocation1], 56
    %s161 = scalar_lea.vmem [#allocation0], 112
    %s162 = scalar_lea.vmem %s161, 7 [#allocation0]
    %v163 = vld [vmem:[%s162] ss:$-1 sm:$0xff]
    %v164 = vrot.slane %v163, 1
    %165 = vst [vmem:[%s160] sm:$0xff] %v164
    %s166 = scalar_lea.vmem %s161, 8 [#allocation0]
    %s167 = scalar_lea.vmem %s166, 7 [#allocation0]
    %v168 = vld [vmem:[%s167] ss:$-1 sm:$0xff]
    %v169 = vrot.slane %v168, 1
    %v170 = vlaneseq
    %v171 = vshrl.u32 %v170, 7
    %vm172 = vcmp.lt.s32.totalorder %v171, 7
    %173 = vst.msk [vmem:[%s160] sm:$0xff] %vm172, %v169
    // Predicated region
    $region36: #{reverse.0} parent=1 // pred_check
      _
    $region37: #{reverse.0} parent=1 // pred_check_branch
      %175 = sbr.rel (0) target = $region39
    $region38: #{reverse.0} parent=1 // pred_region
      // Predicated region
      $region40: #{reverse.0} parent=38 // pred_check
        _
      $region41: #{reverse.0} parent=38 // pred_check_branch
        %177 = sbr.rel (0) target = $region43
      $region42: #{reverse.0} parent=38 // pred_region
        // Predicated region
        $region55: #{reverse.0} parent=42 // pred_check
          _
        $region56: #{reverse.0} parent=42 // pred_check_branch
          %207 = sbr.rel (0) target = $region58
        $region57: #{reverse.0} parent=42 // pred_region
          loop: start=0, step=1, limit=1
          $region59: #{reverse.0} parent=57 // loop_pre_header
            _
          $region60: #{reverse.0} parent=57 // loop_header
            %s209 = sphi 0, %s213
            %p210 = scmp.ge.s32.totalorder %s209, 1
            %s214 = sphi [#allocation1], [#allocation1]
            %s215 = sphi %s1, %s1
          $region61: #{reverse.0} parent=57 // loop_header_branch
            %212 = sbr.rel (%p210) target = $region65
          $region62: #{reverse.0} parent=57 // loop_body
            %v216 = vld [vmem:[%s214] sm:$0xff]
            %217 = vst [vmem:[%s215] sm:$0xff] %v216
            %v218 = vld [vmem:[%s214 + $0x8] sm:$0xff]
            %219 = vst [vmem:[%s215 + $0x8] sm:$0xff] %v218
            %v220 = vld [vmem:[%s214 + $0x10] sm:$0xff]
            %221 = vst [vmem:[%s215 + $0x10] sm:$0xff] %v220
            %v222 = vld [vmem:[%s214 + $0x18] sm:$0xff]
            %223 = vst [vmem:[%s215 + $0x18] sm:$0xff] %v222
            %v224 = vld [vmem:[%s214 + $0x20] sm:$0xff]
            %225 = vst [vmem:[%s215 + $0x20] sm:$0xff] %v224
            %v226 = vld [vmem:[%s214 + $0x28] sm:$0xff]
            %227 = vst [vmem:[%s215 + $0x28] sm:$0xff] %v226
            %v228 = vld [vmem:[%s214 + $0x30] sm:$0xff]
            %229 = vst [vmem:[%s215 + $0x30] sm:$0xff] %v228
            %v230 = vld [vmem:[%s214 + $0x38] sm:$0xff]
            %231 = vst [vmem:[%s215 + $0x38] sm:$0xff] %v230
          $region63: #{reverse.0} parent=57 // loop_footer
            %s213 = sadd.s32 1, %s209
          $region64: #{reverse.0} parent=57 // loop_footer_branch
            %208 = sbr.rel target = $region60
          $region65: #{reverse.0} parent=57 // loop_exit
            _
        $region58: #{reverse.0} parent=42 // pred_fallthru
          _
        // Predicated region
        $region66: #{reverse.0} parent=42 // pred_check
          _
        $region67: #{reverse.0} parent=42 // pred_check_branch
          %233 = sbr.rel target = $region69
        $region68: #{reverse.0} parent=42 // pred_region
          _
        $region69: #{reverse.0} parent=42 // pred_fallthru
          _
      $region43: #{reverse.0} parent=38 // pred_fallthru
        _
      // Predicated region
      $region44: #{reverse.0} parent=38 // pred_check
        _
      $region45: #{reverse.0} parent=38 // pred_check_branch
        %179 = sbr.rel target = $region47
      $region46: #{reverse.0} parent=38 // pred_region
        %s181 = ssub.s32 256, 1
        loop: start=0, step=1, limit=1
        $region48: #{reverse.0} parent=46 // loop_pre_header
          _
        $region49: #{reverse.0} parent=46 // loop_header
          %s183 = sphi 0, %s187
          %p184 = scmp.ge.s32.totalorder %s183, 1
          %s188 = sphi [#allocation1], [#allocation1]
          %s189 = sphi %s1, %s1
        $region50: #{reverse.0} parent=46 // loop_header_branch
          %186 = sbr.rel (%p184) target = $region54
        $region51: #{reverse.0} parent=46 // loop_body
          %v190 = vld [vmem:[%s188] sm:%s181]
          %191 = vst [vmem:[%s189] sm:%s181] %v190
          %v192 = vld [vmem:[%s188 + $0x8] sm:%s181]
          %193 = vst [vmem:[%s189 + $0x8] sm:%s181] %v192
          %v194 = vld [vmem:[%s188 + $0x10] sm:%s181]
          %195 = vst [vmem:[%s189 + $0x10] sm:%s181] %v194
          %v196 = vld [vmem:[%s188 + $0x18] sm:%s181]
          %197 = vst [vmem:[%s189 + $0x18] sm:%s181] %v196
          %v198 = vld [vmem:[%s188 + $0x20] sm:%s181]
          %199 = vst [vmem:[%s189 + $0x20] sm:%s181] %v198
          %v200 = vld [vmem:[%s188 + $0x28] sm:%s181]
          %201 = vst [vmem:[%s189 + $0x28] sm:%s181] %v200
          %v202 = vld [vmem:[%s188 + $0x30] sm:%s181]
          %203 = vst [vmem:[%s189 + $0x30] sm:%s181] %v202
          %v204 = vld [vmem:[%s188 + $0x38] sm:%s181]
          %205 = vst [vmem:[%s189 + $0x38] sm:%s181] %v204
        $region52: #{reverse.0} parent=46 // loop_footer
          %s187 = sadd.s32 1, %s183
        $region53: #{reverse.0} parent=46 // loop_footer_branch
          %182 = sbr.rel target = $region49
        $region54: #{reverse.0} parent=46 // loop_exit
          _
      $region47: #{reverse.0} parent=38 // pred_fallthru
        _
    $region39: #{reverse.0} parent=1 // pred_fallthru
      _
    %234 = vnop

</llo_original>
